<compile_context>
chip_gen: v5e
topology: v5e:2x2
jax: 0.10.0
libtpu: 0.0.40
codegen_flags: <defaults>
</compile_context>

<pallas_src>
import functools
import math

import jax
import jax.numpy as jnp
from jax import lax
from jax.experimental import pallas as pl
from jax.experimental.pallas import tpu as pltpu

LN_EPS = 1e-5                      # PyTorch nn.LayerNorm default
_INV_SQRT2 = 1.0 / math.sqrt(2.0)  # for exact (erf) GELU


def _vmem_limit_bytes():
    # v5e/v6e have 128 MiB physical VMEM (default scoped limit 16/32 MiB),
    # v7x has 64 MiB.  Leave headroom for the runtime.
    try:
        cap = pltpu.get_tpu_info().vmem_capacity_bytes
        return int(min(cap - (16 << 20), 100 << 20))
    except Exception:  # pragma: no cover - conservative fallback
        return 48 << 20


_VMEM_LIMIT = _vmem_limit_bytes()


def _layer_norm_f32(x, gamma, beta):
    # x: (S, D) f32, gamma/beta: (1, D) f32.  Biased variance like nn.LayerNorm.
    mean = jnp.mean(x, axis=-1, keepdims=True)
    ctr = x - mean
    var = jnp.mean(ctr * ctr, axis=-1, keepdims=True)
    return ctr * lax.rsqrt(var + LN_EPS) * gamma + beta


# --------------------------------------------------------------------------- #
# Fused per-layer kernel: LN -> MHA -> +res -> LN -> FF(GELU) -> +res          #
# One grid step per batch element (batch axis marked "parallel").              #
# --------------------------------------------------------------------------- #
def _layer_kernel(x_ref, ln1g_ref, ln1b_ref, wqkv_ref, wo_ref, bo_ref,
                  ln2g_ref, ln2b_ref, w1_ref, fb1_ref, w2_ref, fb2_ref,
                  o_ref, merge_ref, *, heads, dim_head, scale):
    x = x_ref[0].astype(jnp.float32)                      # (S, D) residual in f32
    S, D = x.shape

    # ---------------- PreNorm -> Attention -> + residual ----------------
    xn = _layer_norm_f32(x, ln1g_ref[...], ln1b_ref[...])
    # Single full-K, full-N QKV projection on the MXU (bf16 operands, f32 acc).
    qkv = jnp.dot(xn.astype(jnp.bfloat16), wqkv_ref[...],
                  preferred_element_type=jnp.float32)     # (S, 3D) f32

    def heads_split(base):
        # (heads, S, dh) via a stack of static lane slices (avoids lane-splitting
        # in-kernel reshapes).
        return jnp.stack(
            [qkv[:, base + h * dim_head: base + (h + 1) * dim_head]
             for h in range(heads)], axis=0)

    q = (heads_split(0) * scale).astype(jnp.bfloat16)     # scale folded into q
    k = heads_split(D).astype(jnp.bfloat16)
    v = heads_split(2 * D).astype(jnp.bfloat16)

    # Batched (over heads) score / attention matmuls, f32 softmax statistics.
    dots = jnp.einsum('hqd,hkd->hqk', q, k,
                      preferred_element_type=jnp.float32)  # (H, S, S) f32
    m = jnp.max(dots, axis=-1, keepdims=True)
    e = jnp.exp(dots - m)                                  # EUP
    attn = e * pl.reciprocal(jnp.sum(e, axis=-1, keepdims=True), approx=True)
    outh = jnp.einsum('hqk,hkd->hqd', attn.astype(jnp.bfloat16), v,
                      preferred_element_type=jnp.float32)  # (H, S, dh) f32

    # Merge heads -> (S, D) through the VMEM scratch (lane-slice stores), then a
    # SINGLE full-contraction output projection instead of `heads` K=dh matmuls.
    for h in range(heads):
        merge_ref[:, h * dim_head:(h + 1) * dim_head] = outh[h]
    y = jnp.dot(merge_ref[...].astype(jnp.bfloat16), wo_ref[...],
                preferred_element_type=jnp.float32) + bo_ref[...] + x

    # ---------------- PreNorm -> FeedForward -> + residual ----------------
    xn2 = _layer_norm_f32(y, ln2g_ref[...], ln2b_ref[...])
    h1 = jnp.dot(xn2.astype(jnp.bfloat16), w1_ref[...],
                 preferred_element_type=jnp.float32) + fb1_ref[...]  # (S, mlp)
    # Exact GELU (PyTorch nn.GELU default): 0.5*h*(1+erf(h/sqrt(2))), in f32.
    g = 0.5 * h1 * (1.0 + lax.erf(h1 * _INV_SQRT2))
    y2 = jnp.dot(g.astype(jnp.bfloat16), w2_ref[...],
                 preferred_element_type=jnp.float32) + fb2_ref[...] + y

    o_ref[0] = y2.astype(o_ref.dtype)


def transformer_layer(x, p, *, heads, dim_head):
    """One fused (PreNorm-Attn + res, PreNorm-FF + res) layer. x: (B,S,D) bf16."""
    B, S, D = x.shape
    mlp = p["w1"].shape[1]
    wdt = jnp.bfloat16

    kernel = functools.partial(_layer_kernel, heads=heads, dim_head=dim_head,
                               scale=dim_head ** -0.5)
    const2 = lambda b: (0, 0)

    flops = 2 * B * S * (4 * D * D + 2 * S * D + 2 * D * mlp)
    transcendentals = B * (heads * S * S + S * mlp + heads * S)
    bytes_accessed = (2 * 2 * B * S * D                    # bf16 activation in/out
                      + 2 * (4 * D * D + 2 * D * mlp)      # bf16 weights
                      + 4 * (6 * D + mlp))                 # f32 LN params + biases

    return pl.pallas_call(
        kernel,
        out_shape=jax.ShapeDtypeStruct((B, S, D), x.dtype),
        grid_spec=pltpu.PrefetchScalarGridSpec(
            num_scalar_prefetch=0,
            grid=(B,),
            in_specs=[
                pl.BlockSpec((1, S, D), lambda b: (b, 0, 0)),   # x batch slice
                pl.BlockSpec((1, D), const2),                   # LN1 gamma
                pl.BlockSpec((1, D), const2),                   # LN1 beta
                pl.BlockSpec((D, 3 * D), const2),               # W_qkv (bf16, resident)
                pl.BlockSpec((D, D), const2),                   # W_out (bf16, resident)
                pl.BlockSpec((1, D), const2),                   # b_out
                pl.BlockSpec((1, D), const2),                   # LN2 gamma
                pl.BlockSpec((1, D), const2),                   # LN2 beta
                pl.BlockSpec((D, mlp), const2),                 # W1 (bf16, resident)
                pl.BlockSpec((1, mlp), const2),                 # b1
                pl.BlockSpec((mlp, D), const2),                 # W2 (bf16, resident)
                pl.BlockSpec((1, D), const2),                   # b2
            ],
            out_specs=pl.BlockSpec((1, S, D), lambda b: (b, 0, 0)),
            scratch_shapes=[pltpu.VMEM((S, D), jnp.float32)],   # head-merge buffer
        ),
        compiler_params=pltpu.CompilerParams(
            dimension_semantics=("parallel",),
            vmem_limit_bytes=_VMEM_LIMIT,
        ),
        cost_estimate=pl.CostEstimate(flops=flops,
                                      transcendentals=transcendentals,
                                      bytes_accessed=bytes_accessed),
    )(x,
      p["ln1_g"], p["ln1_b"],
      p["w_qkv"].astype(wdt), p["w_o"].astype(wdt), p["b_o"],
      p["ln2_g"], p["ln2_b"],
      p["w1"].astype(wdt), p["b1"], p["w2"].astype(wdt), p["b2"])


@functools.partial(jax.jit, static_argnames=("heads", "dim_head"))
def transformer_layers(x, layer_params, *, heads, dim_head):
    out_dtype = x.dtype
    # bf16 residual stream in HBM (halves activation bandwidth); all statistics,
    # accumulations and residual adds stay in f32 inside the kernel.
    x = x.astype(jnp.bfloat16)
    for p in layer_params:
        x = transformer_layer(x, p, heads=heads, dim_head=dim_head)
    return x.astype(out_dtype)


# --------------------------------------------------------------------------- #
# Pure-JAX f32 reference (mirrors the PyTorch module with dropout p=0.0).      #
# --------------------------------------------------------------------------- #
def transformer_reference(x, layer_params, *, heads, dim_head):
    scale = dim_head ** -0.5
    for p in layer_params:
        B, S, D = x.shape
        xn = _layer_norm_f32(x, p["ln1_g"], p["ln1_b"])
        qkv = xn @ p["w_qkv"]
        q, k, v = jnp.split(qkv, 3, axis=-1)

        def to_heads(t):
            return t.reshape(B, S, heads, dim_head).transpose(0, 2, 1, 3)

        q, k, v = map(to_heads, (q, k, v))
        dots = jnp.einsum("bhqd,bhkd->bhqk", q, k) * scale
        attn = jax.nn.softmax(dots, axis=-1)
        out = jnp.einsum("bhqk,bhkd->bhqd", attn, v)
        out = out.transpose(0, 2, 1, 3).reshape(B, S, D)
        x = out @ p["w_o"] + p["b_o"] + x

        xn2 = _layer_norm_f32(x, p["ln2_g"], p["ln2_b"])
        h = xn2 @ p["w1"] + p["b1"]
        h = jax.nn.gelu(h, approximate=False)
        x = h @ p["w2"] + p["b2"] + x
    return x


if __name__ == "__main__":
    # Small shapes consistent with the module: dim == heads * dim_head.
    batch, seq = 2, 8
    heads, dim_head = 4, 8
    dim = heads * dim_head          # 32
    mlp_dim = 64
    depth = 2

    key = jax.random.PRNGKey(0)
    keys = jax.random.split(key, 1 + depth)
    x = jax.random.normal(keys[0], (batch, seq, dim), dtype=jnp.float32)

    layer_params = []
    for l in range(depth):
        ks = jax.random.split(keys[1 + l], 11)
        bd = 1.0 / math.sqrt(dim)
        bm = 1.0 / math.sqrt(mlp_dim)
        layer_params.append(dict(
            ln1_g=1.0 + 0.1 * jax.random.normal(ks[0], (1, dim), jnp.float32),
            ln1_b=0.1 * jax.random.normal(ks[1], (1, dim), jnp.float32),
            w_qkv=jax.random.uniform(ks[2], (dim, 3 * dim), jnp.float32, -bd, bd),
            w_o=jax.random.uniform(ks[3], (dim, dim), jnp.float32, -bd, bd),
            b_o=jax.random.uniform(ks[4], (1, dim), jnp.float32, -bd, bd),
            ln2_g=1.0 + 0.1 * jax.random.normal(ks[5], (1, dim), jnp.float32),
            ln2_b=0.1 * jax.random.normal(ks[6], (1, dim), jnp.float32),
            w1=jax.random.uniform(ks[7], (dim, mlp_dim), jnp.float32, -bd, bd),
            b1=jax.random.uniform(ks[8], (1, mlp_dim), jnp.float32, -bd, bd),
            w2=jax.random.uniform(ks[9], (mlp_dim, dim), jnp.float32, -bm, bm),
            b2=jax.random.uniform(ks[10], (1, dim), jnp.float32, -bm, bm),
        ))

    out = transformer_layers(x, layer_params, heads=heads, dim_head=dim_head)
    out = jax.block_until_ready(out)

    ref = transformer_reference(x, layer_params, heads=heads, dim_head=dim_head)
    assert out.shape == (batch, seq, dim)
    # bf16 operands / bf16 residual stream vs. the f32 reference.
    assert jnp.allclose(out, ref, atol=5e-2, rtol=5e-2), "mismatch vs reference"

    print("KERNEL_OK")
</pallas_src>

<mosaic_0001>
module attributes {stable_mosaic.version = 11 : i64} {
  func.func @_layer_kernel(%arg0: i32, %arg1: memref<1x8x32xbf16, #tpu.memory_space<vmem>>, %arg2: memref<1x32xf32, #tpu.memory_space<vmem>>, %arg3: memref<1x32xf32, #tpu.memory_space<vmem>>, %arg4: memref<32x96xbf16, #tpu.memory_space<vmem>>, %arg5: memref<32x32xbf16, #tpu.memory_space<vmem>>, %arg6: memref<1x32xf32, #tpu.memory_space<vmem>>, %arg7: memref<1x32xf32, #tpu.memory_space<vmem>>, %arg8: memref<1x32xf32, #tpu.memory_space<vmem>>, %arg9: memref<32x64xbf16, #tpu.memory_space<vmem>>, %arg10: memref<1x64xf32, #tpu.memory_space<vmem>>, %arg11: memref<64x32xbf16, #tpu.memory_space<vmem>>, %arg12: memref<1x32xf32, #tpu.memory_space<vmem>>, %arg13: memref<1x8x32xbf16, #tpu.memory_space<vmem>>, %arg14: memref<8x32xf32, #tpu.memory_space<vmem>>) attributes {dimension_semantics = [#tpu.dimension_semantics<parallel>], iteration_bounds = array<i64: 2>, scalar_prefetch = 0 : i64, scratch_operands = 1 : i64, tpu.core_type = #tpu.core_type<tc>, window_params = [{transform_indices = @transform_0, window_bounds = array<i64: 1, 8, 32>}, {pipeline_mode = #tpu.pipeline_mode<synchronous>, transform_indices = @transform_1, window_bounds = array<i64: 1, 32>}, {pipeline_mode = #tpu.pipeline_mode<synchronous>, transform_indices = @transform_2, window_bounds = array<i64: 1, 32>}, {pipeline_mode = #tpu.pipeline_mode<synchronous>, transform_indices = @transform_3, window_bounds = array<i64: 32, 96>}, {pipeline_mode = #tpu.pipeline_mode<synchronous>, transform_indices = @transform_4, window_bounds = array<i64: 32, 32>}, {pipeline_mode = #tpu.pipeline_mode<synchronous>, transform_indices = @transform_5, window_bounds = array<i64: 1, 32>}, {pipeline_mode = #tpu.pipeline_mode<synchronous>, transform_indices = @transform_6, window_bounds = array<i64: 1, 32>}, {pipeline_mode = #tpu.pipeline_mode<synchronous>, transform_indices = @transform_7, window_bounds = array<i64: 1, 32>}, {pipeline_mode = #tpu.pipeline_mode<synchronous>, transform_indices = @transform_8, window_bounds = array<i64: 32, 64>}, {pipeline_mode = #tpu.pipeline_mode<synchronous>, transform_indices = @transform_9, window_bounds = array<i64: 1, 64>}, {pipeline_mode = #tpu.pipeline_mode<synchronous>, transform_indices = @transform_10, window_bounds = array<i64: 64, 32>}, {pipeline_mode = #tpu.pipeline_mode<synchronous>, transform_indices = @transform_11, window_bounds = array<i64: 1, 32>}, {transform_indices = @transform_12, window_bounds = array<i64: 1, 8, 32>}]} {
    %c0 = arith.constant 0 : index
    %c0_0 = arith.constant 0 : index
    %c0_1 = arith.constant 0 : index
    %0 = vector.load %arg1[%c0, %c0_0, %c0_1] : memref<1x8x32xbf16, #tpu.memory_space<vmem>>, vector<1x8x32xbf16>
    %1 = vector.shape_cast %0 : vector<1x8x32xbf16> to vector<8x32xbf16>
    %2 = arith.extf %1 : vector<8x32xbf16> to vector<8x32xf32>
    %c0_2 = arith.constant 0 : index
    %c0_3 = arith.constant 0 : index
    %3 = vector.load %arg2[%c0_2, %c0_3] : memref<1x32xf32, #tpu.memory_space<vmem>>, vector<1x32xf32>
    %c0_4 = arith.constant 0 : index
    %c0_5 = arith.constant 0 : index
    %4 = vector.load %arg3[%c0_4, %c0_5] : memref<1x32xf32, #tpu.memory_space<vmem>>, vector<1x32xf32>
    %cst = arith.constant dense<0.000000e+00> : vector<8xf32>
    %5 = vector.multi_reduction <add>, %2, %cst [1] : vector<8x32xf32> to vector<8xf32>
    %6 = vector.shape_cast %5 : vector<8xf32> to vector<8x1xf32>
    %cst_6 = arith.constant 3.200000e+01 : f32
    %7 = vector.broadcast %cst_6 : f32 to vector<8x1xf32>
    %8 = arith.divf %6, %7 : vector<8x1xf32>
    %9 = vector.broadcast %8 : vector<8x1xf32> to vector<8x32xf32>
    %10 = arith.subf %2, %9 : vector<8x32xf32>
    %11 = arith.mulf %10, %10 : vector<8x32xf32>
    %cst_7 = arith.constant dense<0.000000e+00> : vector<8xf32>
    %12 = vector.multi_reduction <add>, %11, %cst_7 [1] : vector<8x32xf32> to vector<8xf32>
    %13 = vector.shape_cast %12 : vector<8xf32> to vector<8x1xf32>
    %cst_8 = arith.constant 3.200000e+01 : f32
    %14 = vector.broadcast %cst_8 : f32 to vector<8x1xf32>
    %15 = arith.divf %13, %14 : vector<8x1xf32>
    %cst_9 = arith.constant 9.99999974E-6 : f32
    %16 = vector.broadcast %cst_9 : f32 to vector<8x1xf32>
    %17 = arith.addf %15, %16 : vector<8x1xf32>
    %18 = math.rsqrt %17 : vector<8x1xf32>
    %19 = vector.broadcast %18 : vector<8x1xf32> to vector<8x32xf32>
    %20 = arith.mulf %10, %19 : vector<8x32xf32>
    %21 = vector.broadcast %3 : vector<1x32xf32> to vector<8x32xf32>
    %22 = arith.mulf %20, %21 : vector<8x32xf32>
    %23 = vector.broadcast %4 : vector<1x32xf32> to vector<8x32xf32>
    %24 = arith.addf %22, %23 : vector<8x32xf32>
    %25 = arith.truncf %24 : vector<8x32xf32> to vector<8x32xbf16>
    %c0_10 = arith.constant 0 : index
    %c0_11 = arith.constant 0 : index
    %26 = vector.load %arg4[%c0_10, %c0_11] : memref<32x96xbf16, #tpu.memory_space<vmem>>, vector<32x96xbf16>
    %cst_12 = arith.constant dense<0.000000e+00> : vector<8x96xf32>
    %27 = tpu.matmul %25, %26, %cst_12 {dimension_numbers = #tpu.dot_dimension_numbers<[1], [0], [0], [1], [0, 0, 1, 1], [], []>} : vector<8x32xbf16>, vector<32x96xbf16>, vector<8x96xf32> -> vector<8x96xf32>
    %28 = vector.extract_strided_slice %27 {offsets = [0, 0], sizes = [8, 8], strides = [1, 1]} : vector<8x96xf32> to vector<8x8xf32>
    %29 = vector.extract_strided_slice %27 {offsets = [0, 8], sizes = [8, 8], strides = [1, 1]} : vector<8x96xf32> to vector<8x8xf32>
    %30 = vector.extract_strided_slice %27 {offsets = [0, 16], sizes = [8, 8], strides = [1, 1]} : vector<8x96xf32> to vector<8x8xf32>
    %31 = vector.extract_strided_slice %27 {offsets = [0, 24], sizes = [8, 8], strides = [1, 1]} : vector<8x96xf32> to vector<8x8xf32>
    %32 = vector.shape_cast %28 : vector<8x8xf32> to vector<1x8x8xf32>
    %33 = vector.shape_cast %29 : vector<8x8xf32> to vector<1x8x8xf32>
    %34 = vector.shape_cast %30 : vector<8x8xf32> to vector<1x8x8xf32>
    %35 = vector.shape_cast %31 : vector<8x8xf32> to vector<1x8x8xf32>
    %36 = tpu.concatenate %32, %33, %34, %35 in 0 : vector<1x8x8xf32>, vector<1x8x8xf32>, vector<1x8x8xf32>, vector<1x8x8xf32> -> vector<4x8x8xf32>
    %cst_13 = arith.constant 0.353553385 : f32
    %37 = vector.broadcast %cst_13 : f32 to vector<4x8x8xf32>
    %38 = arith.mulf %36, %37 : vector<4x8x8xf32>
    %39 = arith.truncf %38 : vector<4x8x8xf32> to vector<4x8x8xbf16>
    %40 = vector.extract_strided_slice %27 {offsets = [0, 32], sizes = [8, 8], strides = [1, 1]} : vector<8x96xf32> to vector<8x8xf32>
    %41 = vector.extract_strided_slice %27 {offsets = [0, 40], sizes = [8, 8], strides = [1, 1]} : vector<8x96xf32> to vector<8x8xf32>
    %42 = vector.extract_strided_slice %27 {offsets = [0, 48], sizes = [8, 8], strides = [1, 1]} : vector<8x96xf32> to vector<8x8xf32>
    %43 = vector.extract_strided_slice %27 {offsets = [0, 56], sizes = [8, 8], strides = [1, 1]} : vector<8x96xf32> to vector<8x8xf32>
    %44 = vector.shape_cast %40 : vector<8x8xf32> to vector<1x8x8xf32>
    %45 = vector.shape_cast %41 : vector<8x8xf32> to vector<1x8x8xf32>
    %46 = vector.shape_cast %42 : vector<8x8xf32> to vector<1x8x8xf32>
    %47 = vector.shape_cast %43 : vector<8x8xf32> to vector<1x8x8xf32>
    %48 = tpu.concatenate %44, %45, %46, %47 in 0 : vector<1x8x8xf32>, vector<1x8x8xf32>, vector<1x8x8xf32>, vector<1x8x8xf32> -> vector<4x8x8xf32>
    %49 = arith.truncf %48 : vector<4x8x8xf32> to vector<4x8x8xbf16>
    %50 = vector.extract_strided_slice %27 {offsets = [0, 64], sizes = [8, 8], strides = [1, 1]} : vector<8x96xf32> to vector<8x8xf32>
    %51 = vector.extract_strided_slice %27 {offsets = [0, 72], sizes = [8, 8], strides = [1, 1]} : vector<8x96xf32> to vector<8x8xf32>
    %52 = vector.extract_strided_slice %27 {offsets = [0, 80], sizes = [8, 8], strides = [1, 1]} : vector<8x96xf32> to vector<8x8xf32>
    %53 = vector.extract_strided_slice %27 {offsets = [0, 88], sizes = [8, 8], strides = [1, 1]} : vector<8x96xf32> to vector<8x8xf32>
    %54 = vector.shape_cast %50 : vector<8x8xf32> to vector<1x8x8xf32>
    %55 = vector.shape_cast %51 : vector<8x8xf32> to vector<1x8x8xf32>
    %56 = vector.shape_cast %52 : vector<8x8xf32> to vector<1x8x8xf32>
    %57 = vector.shape_cast %53 : vector<8x8xf32> to vector<1x8x8xf32>
    %58 = tpu.concatenate %54, %55, %56, %57 in 0 : vector<1x8x8xf32>, vector<1x8x8xf32>, vector<1x8x8xf32>, vector<1x8x8xf32> -> vector<4x8x8xf32>
    %59 = arith.truncf %58 : vector<4x8x8xf32> to vector<4x8x8xbf16>
    "tpu.trace_start"() <{level = 10 : i32, message = "hqd,hkd->hqk"}> : () -> ()
    %cst_14 = arith.constant dense<0.000000e+00> : vector<4x8x8xf32>
    %60 = tpu.matmul %39, %49, %cst_14 {dimension_numbers = #tpu.dot_dimension_numbers<[2], [2], [1], [1], [0, 0, 0, 1, 1, 1], [0], [0]>} : vector<4x8x8xbf16>, vector<4x8x8xbf16>, vector<4x8x8xf32> -> vector<4x8x8xf32>
    "tpu.trace_stop"() : () -> ()
    %cst_15 = arith.constant dense<0xFF800000> : vector<4x8xf32>
    %61 = vector.multi_reduction <maximumf>, %60, %cst_15 [2] : vector<4x8x8xf32> to vector<4x8xf32>
    %62 = vector.shape_cast %61 : vector<4x8xf32> to vector<4x8x1xf32>
    %63 = vector.broadcast %62 : vector<4x8x1xf32> to vector<4x8x8xf32>
    %64 = arith.subf %60, %63 : vector<4x8x8xf32>
    %65 = math.exp %64 : vector<4x8x8xf32>
    %cst_16 = arith.constant dense<0.000000e+00> : vector<4x8xf32>
    %66 = vector.multi_reduction <add>, %65, %cst_16 [2] : vector<4x8x8xf32> to vector<4x8xf32>
    %67 = vector.shape_cast %66 : vector<4x8xf32> to vector<4x8x1xf32>
    %68 = tpu.reciprocal %67 {approx = true} : vector<4x8x1xf32> -> vector<4x8x1xf32>
    %69 = vector.broadcast %68 : vector<4x8x1xf32> to vector<4x8x8xf32>
    %70 = arith.mulf %65, %69 : vector<4x8x8xf32>
    %71 = arith.truncf %70 : vector<4x8x8xf32> to vector<4x8x8xbf16>
    "tpu.trace_start"() <{level = 10 : i32, message = "hqk,hkd->hqd"}> : () -> ()
    %cst_17 = arith.constant dense<0.000000e+00> : vector<4x8x8xf32>
    %72 = tpu.matmul %71, %59, %cst_17 {dimension_numbers = #tpu.dot_dimension_numbers<[2], [1], [1], [2], [0, 0, 0, 1, 1, 2], [0], [0]>} : vector<4x8x8xbf16>, vector<4x8x8xbf16>, vector<4x8x8xf32> -> vector<4x8x8xf32>
    "tpu.trace_stop"() : () -> ()
    %73 = vector.extract_strided_slice %72 {offsets = [0, 0, 0], sizes = [1, 8, 8], strides = [1, 1, 1]} : vector<4x8x8xf32> to vector<1x8x8xf32>
    %74 = vector.shape_cast %73 : vector<1x8x8xf32> to vector<8x8xf32>
    %c0_18 = arith.constant 0 : index
    %c0_19 = arith.constant 0 : index
    %75 = vector.load %arg14[%c0_18, %c0_19] : memref<8x32xf32, #tpu.memory_space<vmem>>, vector<8x8xf32>
    tpu.vector_store %arg14[%c0_18, %c0_19], %74 {strides = array<i32>} : memref<8x32xf32, #tpu.memory_space<vmem>>, vector<8x8xf32>,
    %76 = vector.extract_strided_slice %72 {offsets = [1, 0, 0], sizes = [1, 8, 8], strides = [1, 1, 1]} : vector<4x8x8xf32> to vector<1x8x8xf32>
    %77 = vector.shape_cast %76 : vector<1x8x8xf32> to vector<8x8xf32>
    %c0_20 = arith.constant 0 : index
    %c8 = arith.constant 8 : index
    %78 = vector.load %arg14[%c0_20, %c8] : memref<8x32xf32, #tpu.memory_space<vmem>>, vector<8x8xf32>
    tpu.vector_store %arg14[%c0_20, %c8], %77 {strides = array<i32>} : memref<8x32xf32, #tpu.memory_space<vmem>>, vector<8x8xf32>,
    %79 = vector.extract_strided_slice %72 {offsets = [2, 0, 0], sizes = [1, 8, 8], strides = [1, 1, 1]} : vector<4x8x8xf32> to vector<1x8x8xf32>
    %80 = vector.shape_cast %79 : vector<1x8x8xf32> to vector<8x8xf32>
    %c0_21 = arith.constant 0 : index
    %c16 = arith.constant 16 : index
    %81 = vector.load %arg14[%c0_21, %c16] : memref<8x32xf32, #tpu.memory_space<vmem>>, vector<8x8xf32>
    tpu.vector_store %arg14[%c0_21, %c16], %80 {strides = array<i32>} : memref<8x32xf32, #tpu.memory_space<vmem>>, vector<8x8xf32>,
    %82 = vector.extract_strided_slice %72 {offsets = [3, 0, 0], sizes = [1, 8, 8], strides = [1, 1, 1]} : vector<4x8x8xf32> to vector<1x8x8xf32>
    %83 = vector.shape_cast %82 : vector<1x8x8xf32> to vector<8x8xf32>
    %c0_22 = arith.constant 0 : index
    %c24 = arith.constant 24 : index
    %84 = vector.load %arg14[%c0_22, %c24] : memref<8x32xf32, #tpu.memory_space<vmem>>, vector<8x8xf32>
    tpu.vector_store %arg14[%c0_22, %c24], %83 {strides = array<i32>} : memref<8x32xf32, #tpu.memory_space<vmem>>, vector<8x8xf32>,
    %c0_23 = arith.constant 0 : index
    %c0_24 = arith.constant 0 : index
    %85 = vector.load %arg14[%c0_23, %c0_24] : memref<8x32xf32, #tpu.memory_space<vmem>>, vector<8x32xf32>
    %86 = arith.truncf %85 : vector<8x32xf32> to vector<8x32xbf16>
    %c0_25 = arith.constant 0 : index
    %c0_26 = arith.constant 0 : index
    %87 = vector.load %arg5[%c0_25, %c0_26] : memref<32x32xbf16, #tpu.memory_space<vmem>>, vector<32x32xbf16>
    %cst_27 = arith.constant dense<0.000000e+00> : vector<8x32xf32>
    %88 = tpu.matmul %86, %87, %cst_27 {dimension_numbers = #tpu.dot_dimension_numbers<[1], [0], [0], [1], [0, 0, 1, 1], [], []>} : vector<8x32xbf16>, vector<32x32xbf16>, vector<8x32xf32> -> vector<8x32xf32>
    %c0_28 = arith.constant 0 : index
    %c0_29 = arith.constant 0 : index
    %89 = vector.load %arg6[%c0_28, %c0_29] : memref<1x32xf32, #tpu.memory_space<vmem>>, vector<1x32xf32>
    %90 = vector.broadcast %89 : vector<1x32xf32> to vector<8x32xf32>
    %91 = arith.addf %88, %90 : vector<8x32xf32>
    %92 = arith.addf %91, %2 : vector<8x32xf32>
    %c0_30 = arith.constant 0 : index
    %c0_31 = arith.constant 0 : index
    %93 = vector.load %arg7[%c0_30, %c0_31] : memref<1x32xf32, #tpu.memory_space<vmem>>, vector<1x32xf32>
    %c0_32 = arith.constant 0 : index
    %c0_33 = arith.constant 0 : index
    %94 = vector.load %arg8[%c0_32, %c0_33] : memref<1x32xf32, #tpu.memory_space<vmem>>, vector<1x32xf32>
    %cst_34 = arith.constant dense<0.000000e+00> : vector<8xf32>
    %95 = vector.multi_reduction <add>, %92, %cst_34 [1] : vector<8x32xf32> to vector<8xf32>
    %96 = vector.shape_cast %95 : vector<8xf32> to vector<8x1xf32>
    %cst_35 = arith.constant 3.200000e+01 : f32
    %97 = vector.broadcast %cst_35 : f32 to vector<8x1xf32>
    %98 = arith.divf %96, %97 : vector<8x1xf32>
    %99 = vector.broadcast %98 : vector<8x1xf32> to vector<8x32xf32>
    %100 = arith.subf %92, %99 : vector<8x32xf32>
    %101 = arith.mulf %100, %100 : vector<8x32xf32>
    %cst_36 = arith.constant dense<0.000000e+00> : vector<8xf32>
    %102 = vector.multi_reduction <add>, %101, %cst_36 [1] : vector<8x32xf32> to vector<8xf32>
    %103 = vector.shape_cast %102 : vector<8xf32> to vector<8x1xf32>
    %cst_37 = arith.constant 3.200000e+01 : f32
    %104 = vector.broadcast %cst_37 : f32 to vector<8x1xf32>
    %105 = arith.divf %103, %104 : vector<8x1xf32>
    %cst_38 = arith.constant 9.99999974E-6 : f32
    %106 = vector.broadcast %cst_38 : f32 to vector<8x1xf32>
    %107 = arith.addf %105, %106 : vector<8x1xf32>
    %108 = math.rsqrt %107 : vector<8x1xf32>
    %109 = vector.broadcast %108 : vector<8x1xf32> to vector<8x32xf32>
    %110 = arith.mulf %100, %109 : vector<8x32xf32>
    %111 = vector.broadcast %93 : vector<1x32xf32> to vector<8x32xf32>
    %112 = arith.mulf %110, %111 : vector<8x32xf32>
    %113 = vector.broadcast %94 : vector<1x32xf32> to vector<8x32xf32>
    %114 = arith.addf %112, %113 : vector<8x32xf32>
    %115 = arith.truncf %114 : vector<8x32xf32> to vector<8x32xbf16>
    %c0_39 = arith.constant 0 : index
    %c0_40 = arith.constant 0 : index
    %116 = vector.load %arg9[%c0_39, %c0_40] : memref<32x64xbf16, #tpu.memory_space<vmem>>, vector<32x64xbf16>
    %cst_41 = arith.constant dense<0.000000e+00> : vector<8x64xf32>
    %117 = tpu.matmul %115, %116, %cst_41 {dimension_numbers = #tpu.dot_dimension_numbers<[1], [0], [0], [1], [0, 0, 1, 1], [], []>} : vector<8x32xbf16>, vector<32x64xbf16>, vector<8x64xf32> -> vector<8x64xf32>
    %c0_42 = arith.constant 0 : index
    %c0_43 = arith.constant 0 : index
    %118 = vector.load %arg10[%c0_42, %c0_43] : memref<1x64xf32, #tpu.memory_space<vmem>>, vector<1x64xf32>
    %119 = vector.broadcast %118 : vector<1x64xf32> to vector<8x64xf32>
    %120 = arith.addf %117, %119 : vector<8x64xf32>
    %cst_44 = arith.constant 5.000000e-01 : f32
    %121 = vector.broadcast %cst_44 : f32 to vector<8x64xf32>
    %122 = arith.mulf %121, %120 : vector<8x64xf32>
    %cst_45 = arith.constant 0.707106769 : f32
    %123 = vector.broadcast %cst_45 : f32 to vector<8x64xf32>
    %124 = arith.mulf %120, %123 : vector<8x64xf32>
    %125 = math.erf %124 : vector<8x64xf32>
    %cst_46 = arith.constant 1.000000e+00 : f32
    %126 = vector.broadcast %cst_46 : f32 to vector<8x64xf32>
    %127 = arith.addf %126, %125 : vector<8x64xf32>
    %128 = arith.mulf %122, %127 : vector<8x64xf32>
    %129 = arith.truncf %128 : vector<8x64xf32> to vector<8x64xbf16>
    %c0_47 = arith.constant 0 : index
    %c0_48 = arith.constant 0 : index
    %130 = vector.load %arg11[%c0_47, %c0_48] : memref<64x32xbf16, #tpu.memory_space<vmem>>, vector<64x32xbf16>
    %cst_49 = arith.constant dense<0.000000e+00> : vector<8x32xf32>
    %131 = tpu.matmul %129, %130, %cst_49 {dimension_numbers = #tpu.dot_dimension_numbers<[1], [0], [0], [1], [0, 0, 1, 1], [], []>} : vector<8x64xbf16>, vector<64x32xbf16>, vector<8x32xf32> -> vector<8x32xf32>
    %c0_50 = arith.constant 0 : index
    %c0_51 = arith.constant 0 : index
    %132 = vector.load %arg12[%c0_50, %c0_51] : memref<1x32xf32, #tpu.memory_space<vmem>>, vector<1x32xf32>
    %133 = vector.broadcast %132 : vector<1x32xf32> to vector<8x32xf32>
    %134 = arith.addf %131, %133 : vector<8x32xf32>
    %135 = arith.addf %134, %92 : vector<8x32xf32>
    %136 = arith.truncf %135 : vector<8x32xf32> to vector<8x32xbf16>
    %c0_52 = arith.constant 0 : index
    %c0_53 = arith.constant 0 : index
    %c0_54 = arith.constant 0 : index
    %137 = vector.load %arg13[%c0_52, %c0_53, %c0_54] : memref<1x8x32xbf16, #tpu.memory_space<vmem>>, vector<1x8x32xbf16>
    %138 = vector.shape_cast %137 : vector<1x8x32xbf16> to vector<8x32xbf16>
    %139 = vector.shape_cast %136 : vector<8x32xbf16> to vector<1x8x32xbf16>
    tpu.vector_store %arg13[%c0_52, %c0_53, %c0_54], %139 {strides = array<i32>} : memref<1x8x32xbf16, #tpu.memory_space<vmem>>, vector<1x8x32xbf16>,
    return
  }
  func.func @transform_0(%arg0: i32) -> (i32, i32, i32) {
    %c0_i32 = arith.constant 0 : i32
    %c0_i32_0 = arith.constant 0 : i32
    %c0_i32_1 = arith.constant 0 : i32
    return %arg0, %c0_i32, %c0_i32_0 : i32, i32, i32
  }
  func.func @transform_1(%arg0: i32) -> (i32, i32) {
    %c0_i32 = arith.constant 0 : i32
    %c0_i32_0 = arith.constant 0 : i32
    %c0_i32_1 = arith.constant 0 : i32
    return %c0_i32, %c0_i32_0 : i32, i32
  }
  func.func @transform_2(%arg0: i32) -> (i32, i32) {
    %c0_i32 = arith.constant 0 : i32
    %c0_i32_0 = arith.constant 0 : i32
    %c0_i32_1 = arith.constant 0 : i32
    return %c0_i32, %c0_i32_0 : i32, i32
  }
  func.func @transform_3(%arg0: i32) -> (i32, i32) {
    %c0_i32 = arith.constant 0 : i32
    %c0_i32_0 = arith.constant 0 : i32
    %c0_i32_1 = arith.constant 0 : i32
    return %c0_i32, %c0_i32_0 : i32, i32
  }
  func.func @transform_4(%arg0: i32) -> (i32, i32) {
    %c0_i32 = arith.constant 0 : i32
    %c0_i32_0 = arith.constant 0 : i32
    %c0_i32_1 = arith.constant 0 : i32
    return %c0_i32, %c0_i32_0 : i32, i32
  }
  func.func @transform_5(%arg0: i32) -> (i32, i32) {
    %c0_i32 = arith.constant 0 : i32
    %c0_i32_0 = arith.constant 0 : i32
    %c0_i32_1 = arith.constant 0 : i32
    return %c0_i32, %c0_i32_0 : i32, i32
  }
  func.func @transform_6(%arg0: i32) -> (i32, i32) {
    %c0_i32 = arith.constant 0 : i32
    %c0_i32_0 = arith.constant 0 : i32
    %c0_i32_1 = arith.constant 0 : i32
    return %c0_i32, %c0_i32_0 : i32, i32
  }
  func.func @transform_7(%arg0: i32) -> (i32, i32) {
    %c0_i32 = arith.constant 0 : i32
    %c0_i32_0 = arith.constant 0 : i32
    %c0_i32_1 = arith.constant 0 : i32
    return %c0_i32, %c0_i32_0 : i32, i32
  }
  func.func @transform_8(%arg0: i32) -> (i32, i32) {
    %c0_i32 = arith.constant 0 : i32
    %c0_i32_0 = arith.constant 0 : i32
    %c0_i32_1 = arith.constant 0 : i32
    return %c0_i32, %c0_i32_0 : i32, i32
  }
  func.func @transform_9(%arg0: i32) -> (i32, i32) {
    %c0_i32 = arith.constant 0 : i32
    %c0_i32_0 = arith.constant 0 : i32
    %c0_i32_1 = arith.constant 0 : i32
    return %c0_i32, %c0_i32_0 : i32, i32
  }
  func.func @transform_10(%arg0: i32) -> (i32, i32) {
    %c0_i32 = arith.constant 0 : i32
    %c0_i32_0 = arith.constant 0 : i32
    %c0_i32_1 = arith.constant 0 : i32
    return %c0_i32, %c0_i32_0 : i32, i32
  }
  func.func @transform_11(%arg0: i32) -> (i32, i32) {
    %c0_i32 = arith.constant 0 : i32
    %c0_i32_0 = arith.constant 0 : i32
    %c0_i32_1 = arith.constant 0 : i32
    return %c0_i32, %c0_i32_0 : i32, i32
  }
  func.func @transform_12(%arg0: i32) -> (i32, i32, i32) {
    %c0_i32 = arith.constant 0 : i32
    %c0_i32_0 = arith.constant 0 : i32
    %c0_i32_1 = arith.constant 0 : i32
    return %arg0, %c0_i32, %c0_i32_0 : i32, i32, i32
  }
}

</mosaic_0001>

<llo_original>
// kernel: transformer_layers.2
$region0: #{transformer_layers.2}
  #allocation0 [shape = 'u32[]', space=smem, size = 0x4, offset = 0x4, fixed_abs, tag = 'smem constant byte address 0x4 - core index']
  #allocation1 [shape = 'u32[72,128]{1,0:T(1,128)}', space=vmem, size = 0x9000, scoped, tag = 'internal scratch']
  #allocation2 [shape = 'f32[8,32]{1,0:T(8,128)}', space=vmem, size = 0x1000, scoped, tag = 'scratch operand']
  %s0 = inlined_call_operand.vmem [shape: bf16[2,8,32], index: 0, kind: input, shape index: {}]
  %s1 = inlined_call_operand.vmem [shape: f32[1,32], index: 1, kind: input, shape index: {}]
  %s2 = inlined_call_operand.vmem [shape: f32[1,32], index: 2, kind: input, shape index: {}]
  %s3 = inlined_call_operand.vmem [shape: bf16[32,96], index: 3, kind: input, shape index: {}]
  %s4 = inlined_call_operand.vmem [shape: bf16[32,32], index: 4, kind: input, shape index: {}]
  %s5 = inlined_call_operand.vmem [shape: f32[1,32], index: 5, kind: input, shape index: {}]
  %s6 = inlined_call_operand.vmem [shape: f32[1,32], index: 6, kind: input, shape index: {}]
  %s7 = inlined_call_operand.vmem [shape: f32[1,32], index: 7, kind: input, shape index: {}]
  %s8 = inlined_call_operand.vmem [shape: bf16[32,64], index: 8, kind: input, shape index: {}]
  %s9 = inlined_call_operand.vmem [shape: f32[1,64], index: 9, kind: input, shape index: {}]
  %s10 = inlined_call_operand.vmem [shape: bf16[64,32], index: 10, kind: input, shape index: {}]
  %s11 = inlined_call_operand.vmem [shape: f32[1,32], index: 11, kind: input, shape index: {}]
  %s12 = inlined_call_operand.vmem [shape: bf16[2,8,32], index: 12, kind: output, shape index: {}]
  %s13 = sld [smem:[#allocation0]]
  $region81: #{transformer_layers.2} parent=0
    _
  %s15 = ssub.s32 1, %s13
  %s16 = scalar_select 0, %s15, %s13
  loop: start=0, step=1, limit=4
  $region2: #{transformer_layers.2} parent=0 // loop_pre_header
    _
  $region3: #{transformer_layers.2} parent=0 // loop_header
    %s18 = sphi 0, %s22
    %p19 = scmp.ge.s32.totalorder %s18, 4
    %s28 = sphi 0, %s30
    %s31 = sphi 0, %s28
    %s32 = sphi 0, %s31
    %s48 = sphi 0, %s32
    %s52 = sphi 0, %s52
    %s54 = sphi 0, %s52
    %s55 = sphi 0, %s54
    %s69 = sphi 0, %s55
    %s73 = sphi 0, %s73
    %s75 = sphi 0, %s73
    %s76 = sphi 0, %s75
    %s90 = sphi 0, %s76
    %s94 = sphi 0, %s94
    %s96 = sphi 0, %s94
    %s97 = sphi 0, %s96
    %s111 = sphi 0, %s97
    %s115 = sphi 0, %s115
    %s117 = sphi 0, %s115
    %s118 = sphi 0, %s117
    %s132 = sphi 0, %s118
    %s136 = sphi 0, %s136
    %s138 = sphi 0, %s136
    %s139 = sphi 0, %s138
    %s153 = sphi 0, %s139
    %s157 = sphi 0, %s157
    %s159 = sphi 0, %s157
    %s160 = sphi 0, %s159
    %s174 = sphi 0, %s160
    %s178 = sphi 0, %s178
    %s180 = sphi 0, %s178
    %s181 = sphi 0, %s180
    %s195 = sphi 0, %s181
    %s199 = sphi 0, %s199
    %s201 = sphi 0, %s199
    %s202 = sphi 0, %s201
    %s216 = sphi 0, %s202
    %s220 = sphi 0, %s220
    %s222 = sphi 0, %s220
    %s223 = sphi 0, %s222
    %s237 = sphi 0, %s223
    %s241 = sphi 0, %s241
    %s243 = sphi 0, %s241
    %s244 = sphi 0, %s243
    %s258 = sphi 0, %s244
    %s262 = sphi 0, %s262
    %s264 = sphi 0, %s262
    %s265 = sphi 0, %s264
    %s279 = sphi 0, %s265
    %s285 = sphi 0, %s287
    %s288 = sphi 0, %s285
    %s289 = sphi 0, %s288
    %s305 = sphi 0, %s289
  $region4: #{transformer_layers.2} parent=0 // loop_header_branch
    %21 = sbr.rel (%p19) target = $region8
  $region5: #{transformer_layers.2} parent=0 // loop_body
    %s23 = ssub.s32 %s18, 1
    %s24 = ssub.s32 %s18, 2
    %s25 = sadd.s32 %s18, 1
    %s26 = ssub.s32 %s18, %s25
    %p27 = scmp.eq.s32.totalorder %s26, 0
    %s29 = sadd.s32 %s28, 1
    %s30 = scalar_select %p27, %s28, %s29
    %p33 = pneg %p27
    %p34 = scmp.eq.s32.totalorder %s18, 1
    %p35 = por %p33, %p34
    %p36 = scmp.ne.s32.totalorder %s28, %s31
    %p37 = scmp.eq.s32.totalorder %s18, 0
    %p38 = por %p36, %p37
    %p39 = scmp.ne.s32.totalorder %s28, %s31
    %p40 = scmp.eq.s32.totalorder %s23, 1
    %p41 = por %p39, %p40
    %p42 = scmp.ne.s32.totalorder %s31, %s32
    %p43 = scmp.eq.s32.totalorder %s23, 0
    %p44 = por %p42, %p43
    %p45 = scmp.ne.s32.totalorder %s31, %s32
    %p46 = scmp.eq.s32.totalorder %s24, 1
    %p47 = por %p45, %p46
    %p49 = scmp.ne.s32.totalorder %s32, %s48
    %p50 = scmp.eq.s32.totalorder %s24, 0
    %p51 = por %p49, %p50
    %s53 = sadd.s32 %s52, 1
    %p56 = scmp.eq.s32.totalorder %s18, 1
    %p57 = scmp.ne.s32.totalorder %s52, %s54
    %p58 = scmp.eq.s32.totalorder %s18, 0
    %p59 = por %p57, %p58
    %p60 = scmp.ne.s32.totalorder %s52, %s54
    %p61 = scmp.eq.s32.totalorder %s23, 1
    %p62 = por %p60, %p61
    %p63 = scmp.ne.s32.totalorder %s54, %s55
    %p64 = scmp.eq.s32.totalorder %s23, 0
    %p65 = por %p63, %p64
    %p66 = scmp.ne.s32.totalorder %s54, %s55
    %p67 = scmp.eq.s32.totalorder %s24, 1
    %p68 = por %p66, %p67
    %p70 = scmp.ne.s32.totalorder %s55, %s69
    %p71 = scmp.eq.s32.totalorder %s24, 0
    %p72 = por %p70, %p71
    %s74 = sadd.s32 %s73, 1
    %p77 = scmp.eq.s32.totalorder %s18, 1
    %p78 = scmp.ne.s32.totalorder %s73, %s75
    %p79 = scmp.eq.s32.totalorder %s18, 0
    %p80 = por %p78, %p79
    %p81 = scmp.ne.s32.totalorder %s73, %s75
    %p82 = scmp.eq.s32.totalorder %s23, 1
    %p83 = por %p81, %p82
    %p84 = scmp.ne.s32.totalorder %s75, %s76
    %p85 = scmp.eq.s32.totalorder %s23, 0
    %p86 = por %p84, %p85
    %p87 = scmp.ne.s32.totalorder %s75, %s76
    %p88 = scmp.eq.s32.totalorder %s24, 1
    %p89 = por %p87, %p88
    %p91 = scmp.ne.s32.totalorder %s76, %s90
    %p92 = scmp.eq.s32.totalorder %s24, 0
    %p93 = por %p91, %p92
    %s95 = sadd.s32 %s94, 1
    %p98 = scmp.eq.s32.totalorder %s18, 1
    %p99 = scmp.ne.s32.totalorder %s94, %s96
    %p100 = scmp.eq.s32.totalorder %s18, 0
    %p101 = por %p99, %p100
    %p102 = scmp.ne.s32.totalorder %s94, %s96
    %p103 = scmp.eq.s32.totalorder %s23, 1
    %p104 = por %p102, %p103
    %p105 = scmp.ne.s32.totalorder %s96, %s97
    %p106 = scmp.eq.s32.totalorder %s23, 0
    %p107 = por %p105, %p106
    %p108 = scmp.ne.s32.totalorder %s96, %s97
    %p109 = scmp.eq.s32.totalorder %s24, 1
    %p110 = por %p108, %p109
    %p112 = scmp.ne.s32.totalorder %s97, %s111
    %p113 = scmp.eq.s32.totalorder %s24, 0
    %p114 = por %p112, %p113
    %s116 = sadd.s32 %s115, 1
    %p119 = scmp.eq.s32.totalorder %s18, 1
    %p120 = scmp.ne.s32.totalorder %s115, %s117
    %p121 = scmp.eq.s32.totalorder %s18, 0
    %p122 = por %p120, %p121
    %p123 = scmp.ne.s32.totalorder %s115, %s117
    %p124 = scmp.eq.s32.totalorder %s23, 1
    %p125 = por %p123, %p124
    %p126 = scmp.ne.s32.totalorder %s117, %s118
    %p127 = scmp.eq.s32.totalorder %s23, 0
    %p128 = por %p126, %p127
    %p129 = scmp.ne.s32.totalorder %s117, %s118
    %p130 = scmp.eq.s32.totalorder %s24, 1
    %p131 = por %p129, %p130
    %p133 = scmp.ne.s32.totalorder %s118, %s132
    %p134 = scmp.eq.s32.totalorder %s24, 0
    %p135 = por %p133, %p134
    %s137 = sadd.s32 %s136, 1
    %p140 = scmp.eq.s32.totalorder %s18, 1
    %p141 = scmp.ne.s32.totalorder %s136, %s138
    %p142 = scmp.eq.s32.totalorder %s18, 0
    %p143 = por %p141, %p142
    %p144 = scmp.ne.s32.totalorder %s136, %s138
    %p145 = scmp.eq.s32.totalorder %s23, 1
    %p146 = por %p144, %p145
    %p147 = scmp.ne.s32.totalorder %s138, %s139
    %p148 = scmp.eq.s32.totalorder %s23, 0
    %p149 = por %p147, %p148
    %p150 = scmp.ne.s32.totalorder %s138, %s139
    %p151 = scmp.eq.s32.totalorder %s24, 1
    %p152 = por %p150, %p151
    %p154 = scmp.ne.s32.totalorder %s139, %s153
    %p155 = scmp.eq.s32.totalorder %s24, 0
    %p156 = por %p154, %p155
    %s158 = sadd.s32 %s157, 1
    %p161 = scmp.eq.s32.totalorder %s18, 1
    %p162 = scmp.ne.s32.totalorder %s157, %s159
    %p163 = scmp.eq.s32.totalorder %s18, 0
    %p164 = por %p162, %p163
    %p165 = scmp.ne.s32.totalorder %s157, %s159
    %p166 = scmp.eq.s32.totalorder %s23, 1
    %p167 = por %p165, %p166
    %p168 = scmp.ne.s32.totalorder %s159, %s160
    %p169 = scmp.eq.s32.totalorder %s23, 0
    %p170 = por %p168, %p169
    %p171 = scmp.ne.s32.totalorder %s159, %s160
    %p172 = scmp.eq.s32.totalorder %s24, 1
    %p173 = por %p171, %p172
    %p175 = scmp.ne.s32.totalorder %s160, %s174
    %p176 = scmp.eq.s32.totalorder %s24, 0
    %p177 = por %p175, %p176
    %s179 = sadd.s32 %s178, 1
    %p182 = scmp.eq.s32.totalorder %s18, 1
    %p183 = scmp.ne.s32.totalorder %s178, %s180
    %p184 = scmp.eq.s32.totalorder %s18, 0
    %p185 = por %p183, %p184
    %p186 = scmp.ne.s32.totalorder %s178, %s180
    %p187 = scmp.eq.s32.totalorder %s23, 1
    %p188 = por %p186, %p187
    %p189 = scmp.ne.s32.totalorder %s180, %s181
    %p190 = scmp.eq.s32.totalorder %s23, 0
    %p191 = por %p189, %p190
    %p192 = scmp.ne.s32.totalorder %s180, %s181
    %p193 = scmp.eq.s32.totalorder %s24, 1
    %p194 = por %p192, %p193
    %p196 = scmp.ne.s32.totalorder %s181, %s195
    %p197 = scmp.eq.s32.totalorder %s24, 0
    %p198 = por %p196, %p197
    %s200 = sadd.s32 %s199, 1
    %p203 = scmp.eq.s32.totalorder %s18, 1
    %p204 = scmp.ne.s32.totalorder %s199, %s201
    %p205 = scmp.eq.s32.totalorder %s18, 0
    %p206 = por %p204, %p205
    %p207 = scmp.ne.s32.totalorder %s199, %s201
    %p208 = scmp.eq.s32.totalorder %s23, 1
    %p209 = por %p207, %p208
    %p210 = scmp.ne.s32.totalorder %s201, %s202
    %p211 = scmp.eq.s32.totalorder %s23, 0
    %p212 = por %p210, %p211
    %p213 = scmp.ne.s32.totalorder %s201, %s202
    %p214 = scmp.eq.s32.totalorder %s24, 1
    %p215 = por %p213, %p214
    %p217 = scmp.ne.s32.totalorder %s202, %s216
    %p218 = scmp.eq.s32.totalorder %s24, 0
    %p219 = por %p217, %p218
    %s221 = sadd.s32 %s220, 1
    %p224 = scmp.eq.s32.totalorder %s18, 1
    %p225 = scmp.ne.s32.totalorder %s220, %s222
    %p226 = scmp.eq.s32.totalorder %s18, 0
    %p227 = por %p225, %p226
    %p228 = scmp.ne.s32.totalorder %s220, %s222
    %p229 = scmp.eq.s32.totalorder %s23, 1
    %p230 = por %p228, %p229
    %p231 = scmp.ne.s32.totalorder %s222, %s223
    %p232 = scmp.eq.s32.totalorder %s23, 0
    %p233 = por %p231, %p232
    %p234 = scmp.ne.s32.totalorder %s222, %s223
    %p235 = scmp.eq.s32.totalorder %s24, 1
    %p236 = por %p234, %p235
    %p238 = scmp.ne.s32.totalorder %s223, %s237
    %p239 = scmp.eq.s32.totalorder %s24, 0
    %p240 = por %p238, %p239
    %s242 = sadd.s32 %s241, 1
    %p245 = scmp.eq.s32.totalorder %s18, 1
    %p246 = scmp.ne.s32.totalorder %s241, %s243
    %p247 = scmp.eq.s32.totalorder %s18, 0
    %p248 = por %p246, %p247
    %p249 = scmp.ne.s32.totalorder %s241, %s243
    %p250 = scmp.eq.s32.totalorder %s23, 1
    %p251 = por %p249, %p250
    %p252 = scmp.ne.s32.totalorder %s243, %s244
    %p253 = scmp.eq.s32.totalorder %s23, 0
    %p254 = por %p252, %p253
    %p255 = scmp.ne.s32.totalorder %s243, %s244
    %p256 = scmp.eq.s32.totalorder %s24, 1
    %p257 = por %p255, %p256
    %p259 = scmp.ne.s32.totalorder %s244, %s258
    %p260 = scmp.eq.s32.totalorder %s24, 0
    %p261 = por %p259, %p260
    %s263 = sadd.s32 %s262, 1
    %p266 = scmp.eq.s32.totalorder %s18, 1
    %p267 = scmp.ne.s32.totalorder %s262, %s264
    %p268 = scmp.eq.s32.totalorder %s18, 0
    %p269 = por %p267, %p268
    %p270 = scmp.ne.s32.totalorder %s262, %s264
    %p271 = scmp.eq.s32.totalorder %s23, 1
    %p272 = por %p270, %p271
    %p273 = scmp.ne.s32.totalorder %s264, %s265
    %p274 = scmp.eq.s32.totalorder %s23, 0
    %p275 = por %p273, %p274
    %p276 = scmp.ne.s32.totalorder %s264, %s265
    %p277 = scmp.eq.s32.totalorder %s24, 1
    %p278 = por %p276, %p277
    %p280 = scmp.ne.s32.totalorder %s265, %s279
    %p281 = scmp.eq.s32.totalorder %s24, 0
    %p282 = por %p280, %p281
    %s283 = ssub.s32 %s18, %s25
    %p284 = scmp.eq.s32.totalorder %s283, 0
    %s286 = sadd.s32 %s285, 1
    %s287 = scalar_select %p284, %s285, %s286
    %p290 = pneg %p284
    %p291 = scmp.eq.s32.totalorder %s18, 1
    %p292 = por %p290, %p291
    %p293 = scmp.ne.s32.totalorder %s285, %s288
    %p294 = scmp.eq.s32.totalorder %s18, 0
    %p295 = por %p293, %p294
    %p296 = scmp.ne.s32.totalorder %s285, %s288
    %p297 = scmp.eq.s32.totalorder %s23, 1
    %p298 = por %p296, %p297
    %p299 = scmp.ne.s32.totalorder %s288, %s289
    %p300 = scmp.eq.s32.totalorder %s23, 0
    %p301 = por %p299, %p300
    %p302 = scmp.ne.s32.totalorder %s288, %s289
    %p303 = scmp.eq.s32.totalorder %s24, 1
    %p304 = por %p302, %p303
    %p306 = scmp.ne.s32.totalorder %s289, %s305
    %p307 = scmp.eq.s32.totalorder %s24, 0
    %p308 = por %p306, %p307
    %p309 = scmp.le.s32.totalorder 1, %s18
    %p310 = scmp.lt.s32.totalorder %s18, 3
    %p311 = pnand %p309, %p310
    %p312 = pneg %p311
    // Predicated region
    $region9: #{transformer_layers.2} parent=5 // pred_check
      _
    $region10: #{transformer_layers.2} parent=5 // pred_check_branch
      %314 = sbr.rel (%p311) target = $region12
    $region11: #{transformer_layers.2} parent=5 // pred_region
      %s315 = ssub.s32 %s18, 1
      // Predicated region
      $region13: #{transformer_layers.2} parent=11 // pred_check
        %p316 = pneg %p65
      $region14: #{transformer_layers.2} parent=11 // pred_check_branch
        %318 = sbr.rel (%p316) target = $region16
      $region15: #{transformer_layers.2} parent=11 // pred_region
        _
      $region16: #{transformer_layers.2} parent=11 // pred_fallthru
        _
      // Predicated region
      $region17: #{transformer_layers.2} parent=11 // pred_check
        %p319 = pneg %p86
      $region18: #{transformer_layers.2} parent=11 // pred_check_branch
        %321 = sbr.rel (%p319) target = $region20
      $region19: #{transformer_layers.2} parent=11 // pred_region
        _
      $region20: #{transformer_layers.2} parent=11 // pred_fallthru
        _
      // Predicated region
      $region21: #{transformer_layers.2} parent=11 // pred_check
        %p322 = pneg %p107
      $region22: #{transformer_layers.2} parent=11 // pred_check_branch
        %324 = sbr.rel (%p322) target = $region24
      $region23: #{transformer_layers.2} parent=11 // pred_region
        _
      $region24: #{transformer_layers.2} parent=11 // pred_fallthru
        _
      // Predicated region
      $region25: #{transformer_layers.2} parent=11 // pred_check
        %p325 = pneg %p128
      $region26: #{transformer_layers.2} parent=11 // pred_check_branch
        %327 = sbr.rel (%p325) target = $region28
      $region27: #{transformer_layers.2} parent=11 // pred_region
        _
      $region28: #{transformer_layers.2} parent=11 // pred_fallthru
        _
      // Predicated region
      $region29: #{transformer_layers.2} parent=11 // pred_check
        %p328 = pneg %p149
      $region30: #{transformer_layers.2} parent=11 // pred_check_branch
        %330 = sbr.rel (%p328) target = $region32
      $region31: #{transformer_layers.2} parent=11 // pred_region
        _
      $region32: #{transformer_layers.2} parent=11 // pred_fallthru
        _
      // Predicated region
      $region33: #{transformer_layers.2} parent=11 // pred_check
        %p331 = pneg %p170
      $region34: #{transformer_layers.2} parent=11 // pred_check_branch
        %333 = sbr.rel (%p331) target = $region36
      $region35: #{transformer_layers.2} parent=11 // pred_region
        _
      $region36: #{transformer_layers.2} parent=11 // pred_fallthru
        _
      // Predicated region
      $region37: #{transformer_layers.2} parent=11 // pred_check
        %p334 = pneg %p191
      $region38: #{transformer_layers.2} parent=11 // pred_check_branch
        %336 = sbr.rel (%p334) target = $region40
      $region39: #{transformer_layers.2} parent=11 // pred_region
        _
      $region40: #{transformer_layers.2} parent=11 // pred_fallthru
        _
      // Predicated region
      $region41: #{transformer_layers.2} parent=11 // pred_check
        %p337 = pneg %p212
      $region42: #{transformer_layers.2} parent=11 // pred_check_branch
        %339 = sbr.rel (%p337) target = $region44
      $region43: #{transformer_layers.2} parent=11 // pred_region
        _
      $region44: #{transformer_layers.2} parent=11 // pred_fallthru
        _
      // Predicated region
      $region45: #{transformer_layers.2} parent=11 // pred_check
        %p340 = pneg %p233
      $region46: #{transformer_layers.2} parent=11 // pred_check_branch
        %342 = sbr.rel (%p340) target = $region48
      $region47: #{transformer_layers.2} parent=11 // pred_region
        _
      $region48: #{transformer_layers.2} parent=11 // pred_fallthru
        _
      // Predicated region
      $region49: #{transformer_layers.2} parent=11 // pred_check
        %p343 = pneg %p254
      $region50: #{transformer_layers.2} parent=11 // pred_check_branch
        %345 = sbr.rel (%p343) target = $region52
      $region51: #{transformer_layers.2} parent=11 // pred_region
        _
      $region52: #{transformer_layers.2} parent=11 // pred_fallthru
        _
      // Predicated region
      $region53: #{transformer_layers.2} parent=11 // pred_check
        %p346 = pneg %p275
      $region54: #{transformer_layers.2} parent=11 // pred_check_branch
        %348 = sbr.rel (%p346) target = $region56
      $region55: #{transformer_layers.2} parent=11 // pred_region
        _
      $region56: #{transformer_layers.2} parent=11 // pred_fallthru
        _
    $region12: #{transformer_layers.2} parent=5 // pred_fallthru
      _
    %p349 = scmp.lt.s32.totalorder %s18, 2
    // Predicated region
    $region57: #{transformer_layers.2} parent=5 // pred_check
      %p350 = pneg %p349
    $region58: #{transformer_layers.2} parent=5 // pred_check_branch
      %352 = sbr.rel (%p350) target = $region60
    $region59: #{transformer_layers.2} parent=5 // pred_region
      // Predicated region
      $region61: #{transformer_layers.2} parent=59 // pred_check
        %p353 = pneg %p38
      $region62: #{transformer_layers.2} parent=59 // pred_check_branch
        %355 = sbr.rel (%p353) target = $region64
      $region63: #{transformer_layers.2} parent=59 // pred_region
        %p356 = scmp.lt.s32.totalorder %s18, 1
        %s357 = scalar_select %p356, %s18, 1
        %s358 = smul.addr %s357, 4
        %s359 = scalar_lea.vmem %s0, %s358
      $region64: #{transformer_layers.2} parent=59 // pred_fallthru
        _
    $region60: #{transformer_layers.2} parent=5 // pred_fallthru
      _
    %p360 = scmp.le.s32.totalorder 1, %s18
    %p361 = scmp.lt.s32.totalorder %s18, 3
    %p362 = pnand %p360, %p361
    %p363 = pneg %p362
    // Predicated region
    $region65: #{transformer_layers.2} parent=5 // pred_check
      _
    $region66: #{transformer_layers.2} parent=5 // pred_check_branch
      %365 = sbr.rel (%p362) target = $region68
    $region67: #{transformer_layers.2} parent=5 // pred_region
      %s366 = ssub.s32 %s18, 1
      %p367 = scmp.lt.s32.totalorder %s23, 1
      %s368 = scalar_select %p367, %s23, 1
      %s369 = smul.addr %s368, 4
      %s370 = scalar_lea.vmem %s0, %s369
      %p371 = pneg %p44
      %p372 = pneg %p41
      %p373 = pneg %p65
      %p374 = pneg %p62
      %p375 = pneg %p86
      %p376 = pneg %p83
      %p377 = pneg %p107
      %p378 = pneg %p104
      %p379 = pneg %p128
      %p380 = pneg %p125
      %p381 = pneg %p149
      %p382 = pneg %p146
      %p383 = pneg %p170
      %p384 = pneg %p167
      %p385 = pneg %p191
      %p386 = pneg %p188
      %p387 = pneg %p212
      %p388 = pneg %p209
      %p389 = pneg %p233
      %p390 = pneg %p230
      %p391 = pneg %p254
      %p392 = pneg %p251
      %p393 = pneg %p275
      %p394 = pneg %p272
      %p395 = pneg %p301
      %p396 = pneg %p298
      %p397 = scmp.lt.s32.totalorder %s23, 1
      %s398 = scalar_select %p397, %s23, 1
      %s399 = smul.addr %s398, 4
      %s400 = scalar_lea.vmem %s12, %s399
      %p401 = scmp.lt.s32.totalorder %s23, 1
      %s402 = scalar_select %p401, %s23, 1
      %s403 = smul.addr %s402, 4
      %s404 = scalar_lea.vmem %s0, %s403
      %p405 = scmp.lt.s32.totalorder %s23, 1
      %s406 = scalar_select %p405, %s23, 1
      %s407 = smul.addr %s406, 4
      %s408 = scalar_lea.vmem %s12, %s407
      %v410 = vld [vmem:[%s404] sm:$0xf]
      %v411 = vunpack.c.l.bf16 %v410
      %v412 = vld [vmem:[%s1] sm:$0x1]
      %v413 = vld [vmem:[%s2] sm:$0x1]
      %vm414 = vcmask 261120
      %v415 = vsel %vm414, %v411, 0.0
      %416 = vadd.xlane.f32.xlu0 %v415
      %v417 = vpop.xlane.xlu0 %416
      %v418 = vrcp.pop 32.0
      %v419 = vmul.f32 32.0, %v418
      %v420 = vsub.f32 1.0, %v419
      %v421 = vmul.f32 %v418, %v420
      %v422 = vadd.f32 %v418, %v421
      %vm423 = vweird.f32 %v418
      %v424 = vsel %vm423, %v418, %v422
      %v425 = vmul.f32 %v417, %v424
      %v426 = vsub.f32 %v411, %v425
      %v427 = vmul.f32 %v426, %v426
      %v428 = vsel %vm414, %v427, 0.0
      %429 = vadd.xlane.f32.xlu0 %v428
      %v430 = vpop.xlane.xlu0 %429
      %v431 = vmul.f32 %v430, %v424
      %v432 = vadd.f32 %v431, 1e-05
      %v433 = vrsqrt.pop %v432
      %v434 = vmul.f32 %v433, %v432
      %v435 = vmul.f32 %v434, %v433
      %v436 = vmul.f32 0.5, %v435
      %v437 = vsub.f32 1.5, %v436
      %v438 = vmul.f32 %v433, %v437
      %vm439 = vweird.f32 %v432
      %vm440 = vweird.f32 %v433
      %vm441 = vmor %vm439, %vm440
      %v442 = vsel %vm441, %v433, %v438
      %v443 = vmul.f32 %v426, %v442
      %v445 = vperm.slane %v412, 0
      %v447 = vmul.f32 %v443, %v445
      %v449 = vperm.slane %v413, 0
      %v451 = vadd.f32 %v447, %v449
      %v452 = vpack.c.bf16 %v451, %v451
      %v453 = vld [vmem:[%s3] sm:$0xf]
      %v454 = vld [vmem:[%s3 + $0x4] sm:$0xf]
      %v455 = vld [vmem:[%s3 + $0x8] sm:$0xf]
      %v456 = vld [vmem:[%s3 + $0xc] sm:$0xf]
      %v461 = vunpack.c.l.b16 %v453
      %v462 = vunpack.c.l.b16 %v454
      %v463 = vunpack.c.l.b16 %v455
      %v464 = vunpack.c.l.b16 %v456
      %v465 = vpack.c.b16 %v462, %v461
      %v466 = vpack.c.b16 %v464, %v463
      %v470 = vsel %vm414, %v452, 0
      %472 = vmatpush.bf16.msra.mxu0 0
      %473 = vmatpush.bf16.msra.mxu0 0
      %474 = vmatpush.bf16.msra.mxu0 0
      %475 = vmatpush.bf16.msra.mxu0 0
      %476 = vmatpush.bf16.msra.mxu0 0
      %477 = vmatpush.bf16.msra.mxu0 0
      %478 = vmatpush.bf16.msra.mxu0 %v466
      %479 = vmatpush.bf16.msra.mxu0 %v465
      %480 = vmatmul.bf16.gmra.mxu0 %v470
      %v481 = vpop.f32.mrf.mxu0
      %v482 = vadd.f32 0.0, %v481
      %v483 = vpop.f32.mrf.mxu0
      %484 = vdwg.mxu0
      %486 = vrot.lane.b32.xlu0 %v482, 120
      %v487 = vpop.permute.xlu0 %486
      %489 = vrot.lane.b32.xlu0 %v482, 112
      %v490 = vpop.permute.xlu0 %489
      %492 = vrot.lane.b32.xlu0 %v482, 104
      %v493 = vpop.permute.xlu0 %492
      %v495 = vmul.f32 %v482, 0.35355338
      %v496 = vmul.f32 %v487, 0.35355338
      %v497 = vmul.f32 %v490, 0.35355338
      %v498 = vmul.f32 %v493, 0.35355338
      %v499 = vpack.c.bf16 %v495, %v495
      %v500 = vpack.c.bf16 %v496, %v496
      %v501 = vpack.c.bf16 %v497, %v497
      %v502 = vpack.c.bf16 %v498, %v498
      %v503 = vpack.c.bf16 %v482, %v482
      %v504 = vpack.c.bf16 %v487, %v487
      %v505 = vpack.c.bf16 %v490, %v490
      %v506 = vpack.c.bf16 %v493, %v493
      %v508 = vunpack.c.l.b16 %v503
      %v509 = vpack.c.b16 %v508, %v508
      %510 = vrot.lane.b32.xlu0 %v509, 96
      %v511 = vpop.permute.xlu0 %510
      %vm512 = vcmask 64512
      %v514 = vsel %vm512, %v499, 0
      %v517 = vsel %vm512, %v511, 0
      %519 = vmatpush.bf16.xpose.msra.mxu0 0
      %520 = vmatpush.bf16.xpose.msra.mxu0 0
      %521 = vmatpush.bf16.xpose.msra.mxu0 0
      %522 = vmatpush.bf16.xpose.msra.mxu0 0
      %523 = vmatpush.bf16.xpose.msra.mxu0 0
      %524 = vmatpush.bf16.xpose.msra.mxu0 0
      %525 = vmatpush.bf16.xpose.msra.mxu0 0
      %526 = vmatpush.bf16.xpose.msra.mxu0 %v517
      %527 = vmatmul.bf16.gmra.mxu0 %v514
      %v528 = vpop.f32.mrf.mxu0
      %v529 = vadd.f32 0.0, %v528
      %v530 = vpop.f32.mrf.mxu0
      %531 = vdwg.mxu0
      %v533 = vunpack.c.l.b16 %v504
      %v534 = vpack.c.b16 %v533, %v533
      %535 = vrot.lane.b32.xlu0 %v534, 96
      %v536 = vpop.permute.xlu0 %535
      %v538 = vsel %vm512, %v500, 0
      %v541 = vsel %vm512, %v536, 0
      %543 = vmatpush.bf16.xpose.msra.mxu0 0
      %544 = vmatpush.bf16.xpose.msra.mxu0 0
      %545 = vmatpush.bf16.xpose.msra.mxu0 0
      %546 = vmatpush.bf16.xpose.msra.mxu0 0
      %547 = vmatpush.bf16.xpose.msra.mxu0 0
      %548 = vmatpush.bf16.xpose.msra.mxu0 0
      %549 = vmatpush.bf16.xpose.msra.mxu0 0
      %550 = vmatpush.bf16.xpose.msra.mxu0 %v541
      %551 = vmatmul.bf16.gmra.mxu0 %v538
      %v552 = vpop.f32.mrf.mxu0
      %v553 = vadd.f32 0.0, %v552
      %v554 = vpop.f32.mrf.mxu0
      %555 = vdwg.mxu0
      %v557 = vunpack.c.l.b16 %v505
      %v558 = vpack.c.b16 %v557, %v557
      %559 = vrot.lane.b32.xlu0 %v558, 96
      %v560 = vpop.permute.xlu0 %559
      %v562 = vsel %vm512, %v501, 0
      %v565 = vsel %vm512, %v560, 0
      %567 = vmatpush.bf16.xpose.msra.mxu0 0
      %568 = vmatpush.bf16.xpose.msra.mxu0 0
      %569 = vmatpush.bf16.xpose.msra.mxu0 0
      %570 = vmatpush.bf16.xpose.msra.mxu0 0
      %571 = vmatpush.bf16.xpose.msra.mxu0 0
      %572 = vmatpush.bf16.xpose.msra.mxu0 0
      %573 = vmatpush.bf16.xpose.msra.mxu0 0
      %574 = vmatpush.bf16.xpose.msra.mxu0 %v565
      %575 = vmatmul.bf16.gmra.mxu0 %v562
      %v576 = vpop.f32.mrf.mxu0
      %v577 = vadd.f32 0.0, %v576
      %v578 = vpop.f32.mrf.mxu0
      %579 = vdwg.mxu0
      %v581 = vunpack.c.l.b16 %v506
      %v582 = vpack.c.b16 %v581, %v581
      %583 = vrot.lane.b32.xlu0 %v582, 96
      %v584 = vpop.permute.xlu0 %583
      %v586 = vsel %vm512, %v502, 0
      %v589 = vsel %vm512, %v584, 0
      %591 = vmatpush.bf16.xpose.msra.mxu0 0
      %592 = vmatpush.bf16.xpose.msra.mxu0 0
      %593 = vmatpush.bf16.xpose.msra.mxu0 0
      %594 = vmatpush.bf16.xpose.msra.mxu0 0
      %595 = vmatpush.bf16.xpose.msra.mxu0 0
      %596 = vmatpush.bf16.xpose.msra.mxu0 0
      %597 = vmatpush.bf16.xpose.msra.mxu0 0
      %598 = vmatpush.bf16.xpose.msra.mxu0 %v589
      %599 = vmatmul.bf16.gmra.mxu0 %v586
      %v600 = vpop.f32.mrf.mxu0
      %v601 = vadd.f32 0.0, %v600
      %v602 = vpop.f32.mrf.mxu0
      %603 = vdwg.mxu0
      %v604 = vsel %vm512, %v529, -inf
      %605 = vmax.xlane.f32.xlu0 %v604
      %v606 = vpop.xlane.xlu0 %605
      %v607 = vsel %vm512, %v553, -inf
      %608 = vmax.xlane.f32.xlu0 %v607
      %v609 = vpop.xlane.xlu0 %608
      %v610 = vsel %vm512, %v577, -inf
      %611 = vmax.xlane.f32.xlu0 %v610
      %v612 = vpop.xlane.xlu0 %611
      %v613 = vsel %vm512, %v601, -inf
      %614 = vmax.xlane.f32.xlu0 %v613
      %v615 = vpop.xlane.xlu0 %614
      %v616 = vsub.f32 %v529, %v606
      %v617 = vsub.f32 %v553, %v609
      %v618 = vsub.f32 %v577, %v612
      %v619 = vsub.f32 %v601, %v615
      %v620 = vmul.f32 %v616, 1.442695
      %v621 = vpow.pop %v620
      %v622 = vmul.f32 %v617, 1.442695
      %v623 = vpow.pop %v622
      %v624 = vmul.f32 %v618, 1.442695
      %v625 = vpow.pop %v624
      %v626 = vmul.f32 %v619, 1.442695
      %v627 = vpow.pop %v626
      %v628 = vsel %vm512, %v621, 0.0
      %629 = vadd.xlane.f32.xlu0 %v628
      %v630 = vpop.xlane.xlu0 %629
      %v631 = vsel %vm512, %v623, 0.0
      %632 = vadd.xlane.f32.xlu0 %v631
      %v633 = vpop.xlane.xlu0 %632
      %v634 = vsel %vm512, %v625, 0.0
      %635 = vadd.xlane.f32.xlu0 %v634
      %v636 = vpop.xlane.xlu0 %635
      %v637 = vsel %vm512, %v627, 0.0
      %638 = vadd.xlane.f32.xlu0 %v637
      %v639 = vpop.xlane.xlu0 %638
      %v640 = vrcp.pop %v630
      %v641 = vrcp.pop %v633
      %v642 = vrcp.pop %v636
      %v643 = vrcp.pop %v639
      %v644 = vmul.f32 %v621, %v640
      %v645 = vmul.f32 %v623, %v641
      %v646 = vmul.f32 %v625, %v642
      %v647 = vmul.f32 %v627, %v643
      %v648 = vpack.c.bf16 %v644, %v644
      %v649 = vpack.c.bf16 %v645, %v645
      %v650 = vpack.c.bf16 %v646, %v646
      %v651 = vpack.c.bf16 %v647, %v647
      %652 = vrot.lane.b32.xlu0 %v509, 64
      %v653 = vpop.permute.xlu0 %652
      %v655 = vsel %vm512, %v648, 0
      %vm657 = vcmask 1043456
      %v659 = vsel %vm657, %v653, 0
      %661 = vmatpush.bf16.msra.mxu0 0
      %662 = vmatpush.bf16.msra.mxu0 0
      %663 = vmatpush.bf16.msra.mxu0 0
      %664 = vmatpush.bf16.msra.mxu0 0
      %665 = vmatpush.bf16.msra.mxu0 0
      %666 = vmatpush.bf16.msra.mxu0 0
      %667 = vmatpush.bf16.msra.mxu0 0
      %668 = vmatpush.bf16.msra.mxu0 %v659
      %669 = vmatmul.bf16.gmra.mxu0 %v655
      %v670 = vpop.f32.mrf.mxu0
      %v671 = vadd.f32 0.0, %v670
      %v672 = vpop.f32.mrf.mxu0
      %673 = vdwg.mxu0
      %674 = vrot.lane.b32.xlu0 %v534, 64
      %v675 = vpop.permute.xlu0 %674
      %v677 = vsel %vm512, %v649, 0
      %v680 = vsel %vm657, %v675, 0
      %682 = vmatpush.bf16.msra.mxu0 0
      %683 = vmatpush.bf16.msra.mxu0 0
      %684 = vmatpush.bf16.msra.mxu0 0
      %685 = vmatpush.bf16.msra.mxu0 0
      %686 = vmatpush.bf16.msra.mxu0 0
      %687 = vmatpush.bf16.msra.mxu0 0
      %688 = vmatpush.bf16.msra.mxu0 0
      %689 = vmatpush.bf16.msra.mxu0 %v680
      %690 = vmatmul.bf16.gmra.mxu0 %v677
      %v691 = vpop.f32.mrf.mxu0
      %v692 = vadd.f32 0.0, %v691
      %v693 = vpop.f32.mrf.mxu0
      %694 = vdwg.mxu0
      %695 = vrot.lane.b32.xlu0 %v558, 64
      %v696 = vpop.permute.xlu0 %695
      %v698 = vsel %vm512, %v650, 0
      %v701 = vsel %vm657, %v696, 0
      %703 = vmatpush.bf16.msra.mxu0 0
      %704 = vmatpush.bf16.msra.mxu0 0
      %705 = vmatpush.bf16.msra.mxu0 0
      %706 = vmatpush.bf16.msra.mxu0 0
      %707 = vmatpush.bf16.msra.mxu0 0
      %708 = vmatpush.bf16.msra.mxu0 0
      %709 = vmatpush.bf16.msra.mxu0 0
      %710 = vmatpush.bf16.msra.mxu0 %v701
      %711 = vmatmul.bf16.gmra.mxu0 %v698
      %v712 = vpop.f32.mrf.mxu0
      %v713 = vadd.f32 0.0, %v712
      %v714 = vpop.f32.mrf.mxu0
      %715 = vdwg.mxu0
      %716 = vrot.lane.b32.xlu0 %v582, 64
      %v717 = vpop.permute.xlu0 %716
      %v719 = vsel %vm512, %v651, 0
      %v722 = vsel %vm657, %v717, 0
      %724 = vmatpush.bf16.msra.mxu0 0
      %725 = vmatpush.bf16.msra.mxu0 0
      %726 = vmatpush.bf16.msra.mxu0 0
      %727 = vmatpush.bf16.msra.mxu0 0
      %728 = vmatpush.bf16.msra.mxu0 0
      %729 = vmatpush.bf16.msra.mxu0 0
      %730 = vmatpush.bf16.msra.mxu0 0
      %731 = vmatpush.bf16.msra.mxu0 %v722
      %732 = vmatmul.bf16.gmra.mxu0 %v719
      %v733 = vpop.f32.mrf.mxu0
      %v734 = vadd.f32 0.0, %v733
      %v735 = vpop.f32.mrf.mxu0
      %736 = vdwg.mxu0
      %737 = vst.msk [vmem:[#allocation2] sm:$0xff] %vm512, %v671
      %739 = vrot.lane.b32.xlu0 %v692, 8
      %v740 = vpop.permute.xlu0 %739
      %vm742 = vcmask 130112
      %743 = vst.msk [vmem:[#allocation2] sm:$0xff] %vm742, %v740
      %745 = vrot.lane.b32.xlu0 %v713, 16
      %v746 = vpop.permute.xlu0 %745
      %vm748 = vcmask 195712
      %749 = vst.msk [vmem:[#allocation2] sm:$0xff] %vm748, %v746
      %751 = vrot.lane.b32.xlu0 %v734, 24
      %v752 = vpop.permute.xlu0 %751
      %vm754 = vcmask 261312
      %755 = vst.msk [vmem:[#allocation2] sm:$0xff] %vm754, %v752
      %v756 = vld [vmem:[#allocation2] sm:$0xff]
      %v757 = vpack.c.bf16 %v756, %v756
      %v758 = vld [vmem:[%s4] sm:$0xf]
      %v759 = vld [vmem:[%s4 + $0x4] sm:$0xf]
      %v760 = vld [vmem:[%s4 + $0x8] sm:$0xf]
      %v761 = vld [vmem:[%s4 + $0xc] sm:$0xf]
      %v762 = vld [vmem:[%s5] sm:$0x1]
      %v764 = vperm.slane %v762, 0
      %v770 = vunpack.c.l.b16 %v758
      %v771 = vunpack.c.l.b16 %v759
      %v772 = vunpack.c.l.b16 %v760
      %v773 = vunpack.c.l.b16 %v761
      %v774 = vpack.c.b16 %v771, %v770
      %v775 = vpack.c.b16 %v773, %v772
      %v779 = vsel %vm414, %v757, 0
      %781 = vmatpush.bf16.msra.mxu0 0
      %782 = vmatpush.bf16.msra.mxu0 0
      %783 = vmatpush.bf16.msra.mxu0 0
      %784 = vmatpush.bf16.msra.mxu0 0
      %785 = vmatpush.bf16.msra.mxu0 0
      %786 = vmatpush.bf16.msra.mxu0 0
      %787 = vmatpush.bf16.msra.mxu0 %v775
      %788 = vmatpush.bf16.msra.mxu0 %v774
      %789 = vmatmul.bf16.gmra.mxu0 %v779
      %v790 = vpop.f32.mrf.mxu0
      %v791 = vadd.f32 %v764, %v790
      %v792 = vpop.f32.mrf.mxu0
      %793 = vdwg.mxu0
      %v794 = vadd.f32 %v791, %v411
      %v795 = vld [vmem:[%s6] sm:$0x1]
      %v796 = vld [vmem:[%s7] sm:$0x1]
      %v797 = vsel %vm414, %v794, 0.0
      %798 = vadd.xlane.f32.xlu0 %v797
      %v799 = vpop.xlane.xlu0 %798
      %v800 = vmul.f32 %v799, %v424
      %v801 = vsub.f32 %v794, %v800
      %v802 = vmul.f32 %v801, %v801
      %v803 = vsel %vm414, %v802, 0.0
      %804 = vadd.xlane.f32.xlu0 %v803
      %v805 = vpop.xlane.xlu0 %804
      %v806 = vmul.f32 %v805, %v424
      %v807 = vadd.f32 %v806, 1e-05
      %v808 = vrsqrt.pop %v807
      %v809 = vmul.f32 %v808, %v807
      %v810 = vmul.f32 %v809, %v808
      %v811 = vmul.f32 0.5, %v810
      %v812 = vsub.f32 1.5, %v811
      %v813 = vmul.f32 %v808, %v812
      %vm814 = vweird.f32 %v807
      %vm815 = vweird.f32 %v808
      %vm816 = vmor %vm814, %vm815
      %v817 = vsel %vm816, %v808, %v813
      %v818 = vmul.f32 %v801, %v817
      %v820 = vperm.slane %v795, 0
      %v822 = vmul.f32 %v818, %v820
      %v824 = vperm.slane %v796, 0
      %v826 = vadd.f32 %v822, %v824
      %v827 = vpack.c.bf16 %v826, %v826
      %v828 = vld [vmem:[%s8] sm:$0xf]
      %v829 = vld [vmem:[%s8 + $0x4] sm:$0xf]
      %v830 = vld [vmem:[%s8 + $0x8] sm:$0xf]
      %v831 = vld [vmem:[%s8 + $0xc] sm:$0xf]
      %v832 = vld [vmem:[%s9] sm:$0x1]
      %v834 = vperm.slane %v832, 0
      %v840 = vunpack.c.l.b16 %v828
      %v841 = vunpack.c.l.b16 %v829
      %v842 = vunpack.c.l.b16 %v830
      %v843 = vunpack.c.l.b16 %v831
      %v844 = vpack.c.b16 %v841, %v840
      %v845 = vpack.c.b16 %v843, %v842
      %v849 = vsel %vm414, %v827, 0
      %851 = vmatpush.bf16.msra.mxu0 0
      %852 = vmatpush.bf16.msra.mxu0 0
      %853 = vmatpush.bf16.msra.mxu0 0
      %854 = vmatpush.bf16.msra.mxu0 0
      %855 = vmatpush.bf16.msra.mxu0 0
      %856 = vmatpush.bf16.msra.mxu0 0
      %857 = vmatpush.bf16.msra.mxu0 %v845
      %858 = vmatpush.bf16.msra.mxu0 %v844
      %859 = vmatmul.bf16.gmra.mxu0 %v849
      %v860 = vpop.f32.mrf.mxu0
      %v861 = vadd.f32 %v834, %v860
      %v862 = vpop.f32.mrf.mxu0
      %863 = vdwg.mxu0
      %v864 = vmul.f32 %v861, 0.5
      %v865 = vmul.f32 %v861, 0.70710677
      %v866 = vmul.f32 %v865, %v865
      %v867 = vmin.f32 16.0, %v866
      %v868 = vmul.f32 %v867, 2.1237322e-06
      %v869 = vadd.f32 %v868, 0.00028619796
      %v870 = vmul.f32 %v867, %v869
      %v871 = vadd.f32 %v870, 0.0036580483
      %v872 = vmul.f32 %v867, %v871
      %v873 = vadd.f32 %v872, 0.05243302
      %v874 = vmul.f32 %v867, %v873
      %v875 = vadd.f32 %v874, 0.18741608
      %v876 = vmul.f32 %v867, %v875
      %v877 = vadd.f32 %v876, 1.1283791
      %v878 = vmul.f32 %v865, %v877
      %v879 = vmul.f32 %v867, 3.8918573e-05
      %v880 = vadd.f32 %v879, 0.001143296
      %v881 = vmul.f32 %v867, %v880
      %v882 = vadd.f32 %v881, 0.014752088
      %v883 = vmul.f32 %v867, %v882
      %v884 = vadd.f32 %v883, 0.112945676
      %v885 = vmul.f32 %v867, %v884
      %v886 = vadd.f32 %v885, 0.4994258
      %v887 = vmul.f32 %v867, %v886
      %v888 = vadd.f32 %v887, 1.0
      %v889 = vrcp.pop %v888
      %v890 = vmul.f32 %v888, %v889
      %v891 = vsub.f32 1.0, %v890
      %v892 = vmul.f32 %v889, %v891
      %v893 = vadd.f32 %v889, %v892
      %vm894 = vweird.f32 %v888
      %vm895 = vweird.f32 %v889
      %vm896 = vmor %vm894, %vm895
      %v897 = vsel %vm896, %v889, %v893
      %v898 = vand.u32 2147483647, %v888
      %vm899 = vcmp.eq.f32.partialorder %v898, 8.507059e+37
      %v900 = vand.u32 %v888, 2147483648
      %v901 = vor.u32 1.1754944e-38, %v900
      %v902 = vsel %vm899, %v901, %v897
      %v903 = vmul.f32 %v878, %v902
      %v904 = vmin.f32 %v903, 1.0
      %v905 = vmax.f32 %v904, -1.0
      %v906 = vadd.f32 %v905, 1.0
      %v907 = vmul.f32 %v864, %v906
      %v908 = vpack.c.bf16 %v907, %v907
      %v909 = vld [vmem:[%s10] sm:$0xf]
      %v910 = vld [vmem:[%s10 + $0x4] sm:$0xf]
      %v911 = vld [vmem:[%s10 + $0x8] sm:$0xf]
      %v912 = vld [vmem:[%s10 + $0xc] sm:$0xf]
      %v913 = vld [vmem:[%s10 + $0x10] sm:$0xf]
      %v914 = vld [vmem:[%s10 + $0x14] sm:$0xf]
      %v915 = vld [vmem:[%s10 + $0x18] sm:$0xf]
      %v916 = vld [vmem:[%s10 + $0x1c] sm:$0xf]
      %v917 = vld [vmem:[%s11] sm:$0x1]
      %v919 = vperm.slane %v917, 0
      %v929 = vunpack.c.l.b16 %v909
      %v930 = vunpack.c.l.b16 %v910
      %v931 = vunpack.c.l.b16 %v911
      %v932 = vunpack.c.l.b16 %v912
      %v933 = vunpack.c.l.b16 %v913
      %v934 = vunpack.c.l.b16 %v914
      %v935 = vunpack.c.l.b16 %v915
      %v936 = vunpack.c.l.b16 %v916
      %v937 = vpack.c.b16 %v930, %v929
      %v938 = vpack.c.b16 %v932, %v931
      %v939 = vpack.c.b16 %v934, %v933
      %v940 = vpack.c.b16 %v936, %v935
      %vm945 = vcmask 523264
      %v947 = vsel %vm945, %v908, 0
      %949 = vmatpush.bf16.msra.mxu0 0
      %950 = vmatpush.bf16.msra.mxu0 0
      %951 = vmatpush.bf16.msra.mxu0 0
      %952 = vmatpush.bf16.msra.mxu0 0
      %953 = vmatpush.bf16.msra.mxu0 %v940
      %954 = vmatpush.bf16.msra.mxu0 %v939
      %955 = vmatpush.bf16.msra.mxu0 %v938
      %956 = vmatpush.bf16.msra.mxu0 %v937
      %957 = vmatmul.bf16.gmra.mxu0 %v947
      %v958 = vpop.f32.mrf.mxu0
      %v959 = vadd.f32 %v919, %v958
      %v960 = vpop.f32.mrf.mxu0
      %961 = vdwg.mxu0
      %v962 = vadd.f32 %v959, %v794
      %v963 = vpack.c.bf16 %v962, %v962
      %vm964 = vcmask 257024
      %965 = vst.msk [vmem:[%s408] sm:$0xf] %vm964, %v963
      %p966 = scmp.lt.s32.totalorder %s23, 1
      %s967 = scalar_select %p966, %s23, 1
      %s968 = smul.addr %s967, 4
      %s969 = scalar_lea.vmem %s12, %s968
      // Predicated region
      $region69: #{transformer_layers.2} parent=67 // pred_check
        %p970 = pneg %p298
      $region70: #{transformer_layers.2} parent=67 // pred_check_branch
        %972 = sbr.rel (%p970) target = $region72
      $region71: #{transformer_layers.2} parent=67 // pred_region
        _
      $region72: #{transformer_layers.2} parent=67 // pred_fallthru
        _
    $region68: #{transformer_layers.2} parent=5 // pred_fallthru
      _
    %p973 = scmp.le.s32.totalorder 2, %s18
    // Predicated region
    $region73: #{transformer_layers.2} parent=5 // pred_check
      %p974 = pneg %p973
    $region74: #{transformer_layers.2} parent=5 // pred_check_branch
      %976 = sbr.rel (%p974) target = $region76
    $region75: #{transformer_layers.2} parent=5 // pred_region
      %s977 = ssub.s32 %s18, 2
      // Predicated region
      $region77: #{transformer_layers.2} parent=75 // pred_check
        %p978 = pneg %p304
      $region78: #{transformer_layers.2} parent=75 // pred_check_branch
        %980 = sbr.rel (%p978) target = $region80
      $region79: #{transformer_layers.2} parent=75 // pred_region
        %p981 = scmp.lt.s32.totalorder %s24, 1
        %s982 = scalar_select %p981, %s24, 1
        %s983 = smul.addr %s982, 4
        %s984 = scalar_lea.vmem %s12, %s983
      $region80: #{transformer_layers.2} parent=75 // pred_fallthru
        _
    $region76: #{transformer_layers.2} parent=5 // pred_fallthru
      _
  $region6: #{transformer_layers.2} parent=0 // loop_footer
    %s22 = sadd.s32 1, %s18
  $region7: #{transformer_layers.2} parent=0 // loop_footer_branch
    %17 = sbr.rel target = $region3
  $region8: #{transformer_layers.2} parent=0 // loop_exit
    _

</llo_original>
